<compile_context>
chip_gen: v7x
topology: tpu7x:2x2x1
jax: 0.10.0
libtpu: 0.0.40
codegen_flags: <defaults>
</compile_context>

<pallas_src>
import jax
import jax.numpy as jnp
from jax.experimental import pallas as pl
from jax.experimental.pallas import tpu as pltpu


def _rel_pos_kernel(idx_ref, e_ref, out_ref):
    # idx_ref: (S, 1) int32    -- relative_index as a column vector
    # e_ref:   (A, E) float32  -- E_relative_position table
    # out_ref: (TB, S, E)      -- TB batch rows of the output
    TB, S, E = out_ref.shape
    A = e_ref.shape[0]

    idx = idx_ref[...]                                       # (S, 1) int32

    # Gather E[idx] once per grid step (amortized over the TB batch rows of
    # this block).  A is tiny and static, so a VPU select-accumulate over the
    # A table rows is cheaper than an MXU matmul with K padded 8 -> 128.
    gathered = jnp.zeros((S, E), jnp.float32)
    for a in range(A):                                       # static, small loop
        row = e_ref[pl.ds(a, 1), :].astype(jnp.float32)      # (1, E)
        sel = (idx == a).astype(jnp.float32)                 # (S, 1)
        gathered = gathered + sel * row                      # broadcast -> (S, E)

    # Pure broadcast-store along the leading batch dim (no lane/sublane
    # relayout; stores stay unmasked lane-dense [*, 128] slabs).
    out_ref[...] = jnp.broadcast_to(gathered[None, :, :], (TB, S, E)).astype(out_ref.dtype)


def relative_position_encoding(x, e_rel, rel_index, *, target_block_bytes=4 * 1024 * 1024):
    """x: (B, seq, ...) -- only the shape is used (matches the PyTorch forward).
    e_rel: (A, E_dims) float32 parameter.
    rel_index: (S,) int32 with S = A * object_max_num.
    Returns (B, S, E_dims); requires seq == S (as torch.expand does)."""
    B = x.shape[0]
    seq = x.shape[1]
    S = rel_index.shape[0]
    A, E_dims = e_rel.shape
    assert seq == S, "torch.expand requires seq_length == attributes_num * object_max_num"

    idx2d = rel_index.astype(jnp.int32).reshape(S, 1)
    out_dtype = e_rel.dtype
    itemsize = jnp.dtype(out_dtype).itemsize

    # Enlarge the output block along batch: aim for ~4 MiB per block so the
    # writeback DMA dominates grid-step overhead, while staying well under the
    # default scoped-VMEM limits on all generations (double-buffered ~8 MiB,
    # fits v7x's smaller 64 MiB physical / 32 MiB scoped VMEM).
    row_bytes = S * E_dims * itemsize
    tb = max(1, min(B, target_block_bytes // row_bytes))
    while B % tb != 0:            # keep the grid evenly dividing the batch
        tb -= 1
    nb = B // tb

    cost = pl.CostEstimate(
        flops=0,
        transcendentals=0,
        bytes_accessed=B * S * E_dims * itemsize + A * E_dims * itemsize + S * 4,
    )

    return pl.pallas_call(
        _rel_pos_kernel,
        out_shape=jax.ShapeDtypeStruct((B, S, E_dims), out_dtype),
        grid=(nb,),
        in_specs=[
            pl.BlockSpec((S, 1), lambda b: (0, 0)),          # relative_index (full)
            pl.BlockSpec((A, E_dims), lambda b: (0, 0)),     # embedding table (full)
        ],
        out_specs=pl.BlockSpec((tb, S, E_dims), lambda b: (b, 0, 0)),
        compiler_params=pltpu.CompilerParams(
            dimension_semantics=("parallel",)),              # megacore-safe: no cross-step state
        cost_estimate=cost,
    )(idx2d, e_rel)


if __name__ == "__main__":
    # Small, module-consistent configuration.
    attributes_num = 8
    E_dims = 128
    object_max_num = 4
    seq_length = attributes_num * object_max_num   # 32 (expand requires this)
    batch = 2

    key = jax.random.PRNGKey(0)
    k_e, k_ep, k_x = jax.random.split(key, 3)

    # Deterministic parameter init (mirrors torch.randn shapes).
    E_relative_position = jax.random.normal(k_e, (attributes_num, E_dims), jnp.float32)
    # Unused by forward(), kept for parity with __init__:
    E_property_relative_position = jax.random.normal(k_ep, (4, E_dims), jnp.float32)

    # Buffers from __init__.
    relative_index = jnp.tile(jnp.arange(attributes_num, dtype=jnp.int32),
                              object_max_num)                                   # (S,)
    property_relative_index = jnp.tile(
        jnp.array([0, 1, 1, 1, 2, 2, 2, 3], dtype=jnp.int32), object_max_num)   # unused in forward

    # Example input: only x.shape[0] and x.shape[1] are consumed by forward().
    x = jax.random.normal(k_x, (batch, seq_length, attributes_num), jnp.float32)

    ref = jnp.broadcast_to(jnp.take(E_relative_position, relative_index, axis=0),
                           (batch, seq_length, E_dims))

    # Default path: whole batch in one block (grid=(1,)).
    out = relative_position_encoding(x, E_relative_position, relative_index)
    out = jax.block_until_ready(out)
    assert out.shape == (batch, seq_length, E_dims)
    assert jnp.allclose(out, ref, atol=1e-6), "mismatch vs reference (single-block path)"

    # Tiled path: force small per-step blocks so the batch grid (>1 step) is exercised.
    out_tiled = relative_position_encoding(
        x, E_relative_position, relative_index,
        target_block_bytes=seq_length * E_dims * 4)            # one batch row per block
    out_tiled = jax.block_until_ready(out_tiled)
    assert jnp.allclose(out_tiled, ref, atol=1e-6), "mismatch vs reference (tiled path)"

    print("KERNEL_OK")
</pallas_src>

<mosaic_0001>
module attributes {stable_mosaic.version = 11 : i64} {
  func.func @_rel_pos_kernel(%arg0: i32, %arg1: memref<32x1xi32, #tpu.memory_space<vmem>>, %arg2: memref<8x128xf32, #tpu.memory_space<vmem>>, %arg3: memref<2x32x128xf32, #tpu.memory_space<vmem>>) attributes {dimension_semantics = [#tpu.dimension_semantics<parallel>], iteration_bounds = array<i64: 1>, scalar_prefetch = 0 : i64, scratch_operands = 0 : i64, tpu.core_type = #tpu.core_type<tc>, window_params = [{pipeline_mode = #tpu.pipeline_mode<synchronous>, transform_indices = @transform_0, window_bounds = array<i64: 32, 1>}, {pipeline_mode = #tpu.pipeline_mode<synchronous>, transform_indices = @transform_1, window_bounds = array<i64: 8, 128>}, {transform_indices = @transform_2, window_bounds = array<i64: 2, 32, 128>}]} {
    %c0 = arith.constant 0 : index
    %c0_0 = arith.constant 0 : index
    %0 = vector.load %arg1[%c0, %c0_0] : memref<32x1xi32, #tpu.memory_space<vmem>>, vector<32x1xi32>
    %cst = arith.constant 0.000000e+00 : f32
    %1 = vector.broadcast %cst : f32 to vector<32x128xf32>
    %c0_1 = arith.constant 0 : index
    %c0_2 = arith.constant 0 : index
    %2 = vector.load %arg2[%c0_1, %c0_2] : memref<8x128xf32, #tpu.memory_space<vmem>>, vector<1x128xf32>
    %c0_i32 = arith.constant 0 : i32
    %3 = vector.broadcast %c0_i32 : i32 to vector<32x1xi32>
    %4 = arith.cmpi eq, %0, %3 : vector<32x1xi32>
    %5 = arith.extui %4 : vector<32x1xi1> to vector<32x1xi32>
    %6 = arith.sitofp %5 : vector<32x1xi32> to vector<32x1xf32>
    %7 = vector.broadcast %6 : vector<32x1xf32> to vector<32x128xf32>
    %8 = vector.broadcast %2 : vector<1x128xf32> to vector<32x128xf32>
    %9 = arith.mulf %7, %8 : vector<32x128xf32>
    %10 = arith.addf %1, %9 : vector<32x128xf32>
    %c1 = arith.constant 1 : index
    %c0_3 = arith.constant 0 : index
    %11 = vector.load %arg2[%c1, %c0_3] : memref<8x128xf32, #tpu.memory_space<vmem>>, vector<1x128xf32>
    %c1_i32 = arith.constant 1 : i32
    %12 = vector.broadcast %c1_i32 : i32 to vector<32x1xi32>
    %13 = arith.cmpi eq, %0, %12 : vector<32x1xi32>
    %14 = arith.extui %13 : vector<32x1xi1> to vector<32x1xi32>
    %15 = arith.sitofp %14 : vector<32x1xi32> to vector<32x1xf32>
    %16 = vector.broadcast %15 : vector<32x1xf32> to vector<32x128xf32>
    %17 = vector.broadcast %11 : vector<1x128xf32> to vector<32x128xf32>
    %18 = arith.mulf %16, %17 : vector<32x128xf32>
    %19 = arith.addf %10, %18 : vector<32x128xf32>
    %c2 = arith.constant 2 : index
    %c0_4 = arith.constant 0 : index
    %20 = vector.load %arg2[%c2, %c0_4] : memref<8x128xf32, #tpu.memory_space<vmem>>, vector<1x128xf32>
    %c2_i32 = arith.constant 2 : i32
    %21 = vector.broadcast %c2_i32 : i32 to vector<32x1xi32>
    %22 = arith.cmpi eq, %0, %21 : vector<32x1xi32>
    %23 = arith.extui %22 : vector<32x1xi1> to vector<32x1xi32>
    %24 = arith.sitofp %23 : vector<32x1xi32> to vector<32x1xf32>
    %25 = vector.broadcast %24 : vector<32x1xf32> to vector<32x128xf32>
    %26 = vector.broadcast %20 : vector<1x128xf32> to vector<32x128xf32>
    %27 = arith.mulf %25, %26 : vector<32x128xf32>
    %28 = arith.addf %19, %27 : vector<32x128xf32>
    %c3 = arith.constant 3 : index
    %c0_5 = arith.constant 0 : index
    %29 = vector.load %arg2[%c3, %c0_5] : memref<8x128xf32, #tpu.memory_space<vmem>>, vector<1x128xf32>
    %c3_i32 = arith.constant 3 : i32
    %30 = vector.broadcast %c3_i32 : i32 to vector<32x1xi32>
    %31 = arith.cmpi eq, %0, %30 : vector<32x1xi32>
    %32 = arith.extui %31 : vector<32x1xi1> to vector<32x1xi32>
    %33 = arith.sitofp %32 : vector<32x1xi32> to vector<32x1xf32>
    %34 = vector.broadcast %33 : vector<32x1xf32> to vector<32x128xf32>
    %35 = vector.broadcast %29 : vector<1x128xf32> to vector<32x128xf32>
    %36 = arith.mulf %34, %35 : vector<32x128xf32>
    %37 = arith.addf %28, %36 : vector<32x128xf32>
    %c4 = arith.constant 4 : index
    %c0_6 = arith.constant 0 : index
    %38 = vector.load %arg2[%c4, %c0_6] : memref<8x128xf32, #tpu.memory_space<vmem>>, vector<1x128xf32>
    %c4_i32 = arith.constant 4 : i32
    %39 = vector.broadcast %c4_i32 : i32 to vector<32x1xi32>
    %40 = arith.cmpi eq, %0, %39 : vector<32x1xi32>
    %41 = arith.extui %40 : vector<32x1xi1> to vector<32x1xi32>
    %42 = arith.sitofp %41 : vector<32x1xi32> to vector<32x1xf32>
    %43 = vector.broadcast %42 : vector<32x1xf32> to vector<32x128xf32>
    %44 = vector.broadcast %38 : vector<1x128xf32> to vector<32x128xf32>
    %45 = arith.mulf %43, %44 : vector<32x128xf32>
    %46 = arith.addf %37, %45 : vector<32x128xf32>
    %c5 = arith.constant 5 : index
    %c0_7 = arith.constant 0 : index
    %47 = vector.load %arg2[%c5, %c0_7] : memref<8x128xf32, #tpu.memory_space<vmem>>, vector<1x128xf32>
    %c5_i32 = arith.constant 5 : i32
    %48 = vector.broadcast %c5_i32 : i32 to vector<32x1xi32>
    %49 = arith.cmpi eq, %0, %48 : vector<32x1xi32>
    %50 = arith.extui %49 : vector<32x1xi1> to vector<32x1xi32>
    %51 = arith.sitofp %50 : vector<32x1xi32> to vector<32x1xf32>
    %52 = vector.broadcast %51 : vector<32x1xf32> to vector<32x128xf32>
    %53 = vector.broadcast %47 : vector<1x128xf32> to vector<32x128xf32>
    %54 = arith.mulf %52, %53 : vector<32x128xf32>
    %55 = arith.addf %46, %54 : vector<32x128xf32>
    %c6 = arith.constant 6 : index
    %c0_8 = arith.constant 0 : index
    %56 = vector.load %arg2[%c6, %c0_8] : memref<8x128xf32, #tpu.memory_space<vmem>>, vector<1x128xf32>
    %c6_i32 = arith.constant 6 : i32
    %57 = vector.broadcast %c6_i32 : i32 to vector<32x1xi32>
    %58 = arith.cmpi eq, %0, %57 : vector<32x1xi32>
    %59 = arith.extui %58 : vector<32x1xi1> to vector<32x1xi32>
    %60 = arith.sitofp %59 : vector<32x1xi32> to vector<32x1xf32>
    %61 = vector.broadcast %60 : vector<32x1xf32> to vector<32x128xf32>
    %62 = vector.broadcast %56 : vector<1x128xf32> to vector<32x128xf32>
    %63 = arith.mulf %61, %62 : vector<32x128xf32>
    %64 = arith.addf %55, %63 : vector<32x128xf32>
    %c7 = arith.constant 7 : index
    %c0_9 = arith.constant 0 : index
    %65 = vector.load %arg2[%c7, %c0_9] : memref<8x128xf32, #tpu.memory_space<vmem>>, vector<1x128xf32>
    %c7_i32 = arith.constant 7 : i32
    %66 = vector.broadcast %c7_i32 : i32 to vector<32x1xi32>
    %67 = arith.cmpi eq, %0, %66 : vector<32x1xi32>
    %68 = arith.extui %67 : vector<32x1xi1> to vector<32x1xi32>
    %69 = arith.sitofp %68 : vector<32x1xi32> to vector<32x1xf32>
    %70 = vector.broadcast %69 : vector<32x1xf32> to vector<32x128xf32>
    %71 = vector.broadcast %65 : vector<1x128xf32> to vector<32x128xf32>
    %72 = arith.mulf %70, %71 : vector<32x128xf32>
    %73 = arith.addf %64, %72 : vector<32x128xf32>
    %74 = vector.shape_cast %73 : vector<32x128xf32> to vector<1x32x128xf32>
    %75 = vector.shape_cast %74 : vector<1x32x128xf32> to vector<1x32x128xf32>
    %76 = vector.broadcast %75 : vector<1x32x128xf32> to vector<2x32x128xf32>
    %c0_10 = arith.constant 0 : index
    %c0_11 = arith.constant 0 : index
    %c0_12 = arith.constant 0 : index
    %77 = vector.load %arg3[%c0_10, %c0_11, %c0_12] : memref<2x32x128xf32, #tpu.memory_space<vmem>>, vector<2x32x128xf32>
    tpu.vector_store %arg3[%c0_10, %c0_11, %c0_12], %76 {strides = array<i32>} : memref<2x32x128xf32, #tpu.memory_space<vmem>>, vector<2x32x128xf32>,
    return
  }
  func.func @transform_0(%arg0: i32) -> (i32, i32) {
    %c0_i32 = arith.constant 0 : i32
    %c0_i32_0 = arith.constant 0 : i32
    %c0_i32_1 = arith.constant 0 : i32
    return %c0_i32, %c0_i32_0 : i32, i32
  }
  func.func @transform_1(%arg0: i32) -> (i32, i32) {
    %c0_i32 = arith.constant 0 : i32
    %c0_i32_0 = arith.constant 0 : i32
    %c0_i32_1 = arith.constant 0 : i32
    return %c0_i32, %c0_i32_0 : i32, i32
  }
  func.func @transform_2(%arg0: i32) -> (i32, i32, i32) {
    %c0_i32 = arith.constant 0 : i32
    %c0_i32_0 = arith.constant 0 : i32
    %c0_i32_1 = arith.constant 0 : i32
    return %arg0, %c0_i32, %c0_i32_0 : i32, i32, i32
  }
}

</mosaic_0001>

<llo_original>
// kernel: tpu_custom_call.1
$region0: #{tpu_custom_call.1}
  #allocation0 [shape = 'u32[]', space=smem, size = 0x4, offset = 0x4, fixed_abs, tag = 'smem constant byte address 0x4 - core index']
  #allocation1 [shape = 'u32[144,128]{1,0:T(1,128)}', space=vmem, size = 0x12000, scoped, tag = 'internal scratch']
  %s0 = inlined_call_operand.vmem [shape: s32[32,1], index: 0, kind: input, shape index: {}]
  %s1 = inlined_call_operand.vmem [shape: f32[8,128], index: 1, kind: input, shape index: {}]
  %s2 = inlined_call_operand.hbm [shape: f32[2,32,128], index: 2, kind: output, shape index: {}]
  %s3 = sld [smem:[#allocation0]]
  $region18: #{tpu_custom_call.1} parent=0
    _
  %s5 = ssub.s32 1, %s3
  %s6 = scalar_select 0, %s5, %s3
  $region1: #{tpu_custom_call.1} parent=0
    #allocation2 [shape = 'u8[32768]{0}', space=vmem, size = 0x8000, scoped, tag = 'output window, operand 0, single buffered']
    #allocation3 [shape = 's32[1]{0}', space=sflag, size = 0x4, scoped, tag = 'scoped memory for tpu_custom_call.1']
    %7 = vsyncpa [#allocation3], 0
    // Predicated region
    $region2: #{tpu_custom_call.1} parent=1 // pred_check
      _
    $region3: #{tpu_custom_call.1} parent=1 // pred_check_branch
      %9 = sbr.rel (0) target = $region5
    $region4: #{tpu_custom_call.1} parent=1 // pred_region
      _
    $region5: #{tpu_custom_call.1} parent=1 // pred_fallthru
      _
    // Predicated region
    $region6: #{tpu_custom_call.1} parent=1 // pred_check
      _
    $region7: #{tpu_custom_call.1} parent=1 // pred_check_branch
      %11 = sbr.rel (0) target = $region9
    $region8: #{tpu_custom_call.1} parent=1 // pred_region
      _
    $region9: #{tpu_custom_call.1} parent=1 // pred_fallthru
      _
    %v12 = vld [vmem:[%s0] sm:$0xff]
    %v13 = vld [vmem:[%s0 + $0x8] sm:$0xff]
    %v14 = vld [vmem:[%s0 + $0x10] sm:$0xff]
    %v15 = vld [vmem:[%s0 + $0x18] sm:$0xff]
    %v16 = vld [vmem:[%s1] sm:$0x1]
    %vm17 = vcmp.eq.s32.totalorder %v12, 0
    %vm18 = vcmp.eq.s32.totalorder %v13, 0
    %vm19 = vcmp.eq.s32.totalorder %v14, 0
    %vm20 = vcmp.eq.s32.totalorder %v15, 0
    %v21 = vsel %vm17, 1, 0
    %v22 = vsel %vm18, 1, 0
    %v23 = vsel %vm19, 1, 0
    %v24 = vsel %vm20, 1, 0
    %v25 = vcvt.s32.f32 %v21
    %v26 = vcvt.s32.f32 %v22
    %v27 = vcvt.s32.f32 %v23
    %v28 = vcvt.s32.f32 %v24
    %30 = vset.pattern.permute.xlu0 0
    %31 = vperm.xlu0 %30, %v25
    %v32 = vpop.permute.xlu0 %31
    %35 = vset.pattern.permute.xlu0 0
    %36 = vperm.xlu0 %35, %v26
    %v37 = vpop.permute.xlu0 %36
    %40 = vset.pattern.permute.xlu0 0
    %41 = vperm.xlu0 %40, %v27
    %v42 = vpop.permute.xlu0 %41
    %45 = vset.pattern.permute.xlu0 0
    %46 = vperm.xlu0 %45, %v28
    %v47 = vpop.permute.xlu0 %46
    %v49 = vlaneseq
    %v50 = vshrl.u32 %v49, 7
    %v51 = vsub.s32 0, %v50
    %v52 = vrot.slane %v16, %v51
    %v53 = vmul.f32 %v32, %v52
    %v54 = vmul.f32 %v37, %v52
    %v55 = vmul.f32 %v42, %v52
    %v56 = vmul.f32 %v47, %v52
    %v57 = vadd.f32 %v53, 0.0
    %v58 = vadd.f32 %v54, 0.0
    %v59 = vadd.f32 %v55, 0.0
    %v60 = vadd.f32 %v56, 0.0
    %v61 = vld [vmem:[%s1 + $0x1] sm:$0x1]
    %vm62 = vcmp.eq.s32.totalorder %v12, 1
    %vm63 = vcmp.eq.s32.totalorder %v13, 1
    %vm64 = vcmp.eq.s32.totalorder %v14, 1
    %vm65 = vcmp.eq.s32.totalorder %v15, 1
    %v66 = vsel %vm62, 1, 0
    %v67 = vsel %vm63, 1, 0
    %v68 = vsel %vm64, 1, 0
    %v69 = vsel %vm65, 1, 0
    %v70 = vcvt.s32.f32 %v66
    %v71 = vcvt.s32.f32 %v67
    %v72 = vcvt.s32.f32 %v68
    %v73 = vcvt.s32.f32 %v69
    %75 = vset.pattern.permute.xlu0 0
    %76 = vperm.xlu0 %75, %v70
    %v77 = vpop.permute.xlu0 %76
    %80 = vset.pattern.permute.xlu0 0
    %81 = vperm.xlu0 %80, %v71
    %v82 = vpop.permute.xlu0 %81
    %85 = vset.pattern.permute.xlu0 0
    %86 = vperm.xlu0 %85, %v72
    %v87 = vpop.permute.xlu0 %86
    %90 = vset.pattern.permute.xlu0 0
    %91 = vperm.xlu0 %90, %v73
    %v92 = vpop.permute.xlu0 %91
    %v94 = vlaneseq
    %v95 = vshrl.u32 %v94, 7
    %v96 = vsub.s32 0, %v95
    %v97 = vrot.slane %v61, %v96
    %v98 = vmul.f32 %v77, %v97
    %v99 = vmul.f32 %v82, %v97
    %v100 = vmul.f32 %v87, %v97
    %v101 = vmul.f32 %v92, %v97
    %v102 = vadd.f32 %v57, %v98
    %v103 = vadd.f32 %v58, %v99
    %v104 = vadd.f32 %v59, %v100
    %v105 = vadd.f32 %v60, %v101
    %v106 = vld [vmem:[%s1 + $0x2] sm:$0x1]
    %vm107 = vcmp.eq.s32.totalorder %v12, 2
    %vm108 = vcmp.eq.s32.totalorder %v13, 2
    %vm109 = vcmp.eq.s32.totalorder %v14, 2
    %vm110 = vcmp.eq.s32.totalorder %v15, 2
    %v111 = vsel %vm107, 1, 0
    %v112 = vsel %vm108, 1, 0
    %v113 = vsel %vm109, 1, 0
    %v114 = vsel %vm110, 1, 0
    %v115 = vcvt.s32.f32 %v111
    %v116 = vcvt.s32.f32 %v112
    %v117 = vcvt.s32.f32 %v113
    %v118 = vcvt.s32.f32 %v114
    %120 = vset.pattern.permute.xlu0 0
    %121 = vperm.xlu0 %120, %v115
    %v122 = vpop.permute.xlu0 %121
    %125 = vset.pattern.permute.xlu0 0
    %126 = vperm.xlu0 %125, %v116
    %v127 = vpop.permute.xlu0 %126
    %130 = vset.pattern.permute.xlu0 0
    %131 = vperm.xlu0 %130, %v117
    %v132 = vpop.permute.xlu0 %131
    %135 = vset.pattern.permute.xlu0 0
    %136 = vperm.xlu0 %135, %v118
    %v137 = vpop.permute.xlu0 %136
    %v139 = vlaneseq
    %v140 = vshrl.u32 %v139, 7
    %v141 = vsub.s32 0, %v140
    %v142 = vrot.slane %v106, %v141
    %v143 = vmul.f32 %v122, %v142
    %v144 = vmul.f32 %v127, %v142
    %v145 = vmul.f32 %v132, %v142
    %v146 = vmul.f32 %v137, %v142
    %v147 = vadd.f32 %v102, %v143
    %v148 = vadd.f32 %v103, %v144
    %v149 = vadd.f32 %v104, %v145
    %v150 = vadd.f32 %v105, %v146
    %v151 = vld [vmem:[%s1 + $0x3] sm:$0x1]
    %vm152 = vcmp.eq.s32.totalorder %v12, 3
    %vm153 = vcmp.eq.s32.totalorder %v13, 3
    %vm154 = vcmp.eq.s32.totalorder %v14, 3
    %vm155 = vcmp.eq.s32.totalorder %v15, 3
    %v156 = vsel %vm152, 1, 0
    %v157 = vsel %vm153, 1, 0
    %v158 = vsel %vm154, 1, 0
    %v159 = vsel %vm155, 1, 0
    %v160 = vcvt.s32.f32 %v156
    %v161 = vcvt.s32.f32 %v157
    %v162 = vcvt.s32.f32 %v158
    %v163 = vcvt.s32.f32 %v159
    %165 = vset.pattern.permute.xlu0 0
    %166 = vperm.xlu0 %165, %v160
    %v167 = vpop.permute.xlu0 %166
    %170 = vset.pattern.permute.xlu0 0
    %171 = vperm.xlu0 %170, %v161
    %v172 = vpop.permute.xlu0 %171
    %175 = vset.pattern.permute.xlu0 0
    %176 = vperm.xlu0 %175, %v162
    %v177 = vpop.permute.xlu0 %176
    %180 = vset.pattern.permute.xlu0 0
    %181 = vperm.xlu0 %180, %v163
    %v182 = vpop.permute.xlu0 %181
    %v184 = vlaneseq
    %v185 = vshrl.u32 %v184, 7
    %v186 = vsub.s32 0, %v185
    %v187 = vrot.slane %v151, %v186
    %v188 = vmul.f32 %v167, %v187
    %v189 = vmul.f32 %v172, %v187
    %v190 = vmul.f32 %v177, %v187
    %v191 = vmul.f32 %v182, %v187
    %v192 = vadd.f32 %v147, %v188
    %v193 = vadd.f32 %v148, %v189
    %v194 = vadd.f32 %v149, %v190
    %v195 = vadd.f32 %v150, %v191
    %v196 = vld [vmem:[%s1 + $0x4] sm:$0x1]
    %vm197 = vcmp.eq.s32.totalorder %v12, 4
    %vm198 = vcmp.eq.s32.totalorder %v13, 4
    %vm199 = vcmp.eq.s32.totalorder %v14, 4
    %vm200 = vcmp.eq.s32.totalorder %v15, 4
    %v201 = vsel %vm197, 1, 0
    %v202 = vsel %vm198, 1, 0
    %v203 = vsel %vm199, 1, 0
    %v204 = vsel %vm200, 1, 0
    %v205 = vcvt.s32.f32 %v201
    %v206 = vcvt.s32.f32 %v202
    %v207 = vcvt.s32.f32 %v203
    %v208 = vcvt.s32.f32 %v204
    %210 = vset.pattern.permute.xlu0 0
    %211 = vperm.xlu0 %210, %v205
    %v212 = vpop.permute.xlu0 %211
    %215 = vset.pattern.permute.xlu0 0
    %216 = vperm.xlu0 %215, %v206
    %v217 = vpop.permute.xlu0 %216
    %220 = vset.pattern.permute.xlu0 0
    %221 = vperm.xlu0 %220, %v207
    %v222 = vpop.permute.xlu0 %221
    %225 = vset.pattern.permute.xlu0 0
    %226 = vperm.xlu0 %225, %v208
    %v227 = vpop.permute.xlu0 %226
    %v229 = vlaneseq
    %v230 = vshrl.u32 %v229, 7
    %v231 = vsub.s32 0, %v230
    %v232 = vrot.slane %v196, %v231
    %v233 = vmul.f32 %v212, %v232
    %v234 = vmul.f32 %v217, %v232
    %v235 = vmul.f32 %v222, %v232
    %v236 = vmul.f32 %v227, %v232
    %v237 = vadd.f32 %v192, %v233
    %v238 = vadd.f32 %v193, %v234
    %v239 = vadd.f32 %v194, %v235
    %v240 = vadd.f32 %v195, %v236
    %v241 = vld [vmem:[%s1 + $0x5] sm:$0x1]
    %vm242 = vcmp.eq.s32.totalorder %v12, 5
    %vm243 = vcmp.eq.s32.totalorder %v13, 5
    %vm244 = vcmp.eq.s32.totalorder %v14, 5
    %vm245 = vcmp.eq.s32.totalorder %v15, 5
    %v246 = vsel %vm242, 1, 0
    %v247 = vsel %vm243, 1, 0
    %v248 = vsel %vm244, 1, 0
    %v249 = vsel %vm245, 1, 0
    %v250 = vcvt.s32.f32 %v246
    %v251 = vcvt.s32.f32 %v247
    %v252 = vcvt.s32.f32 %v248
    %v253 = vcvt.s32.f32 %v249
    %255 = vset.pattern.permute.xlu0 0
    %256 = vperm.xlu0 %255, %v250
    %v257 = vpop.permute.xlu0 %256
    %260 = vset.pattern.permute.xlu0 0
    %261 = vperm.xlu0 %260, %v251
    %v262 = vpop.permute.xlu0 %261
    %265 = vset.pattern.permute.xlu0 0
    %266 = vperm.xlu0 %265, %v252
    %v267 = vpop.permute.xlu0 %266
    %270 = vset.pattern.permute.xlu0 0
    %271 = vperm.xlu0 %270, %v253
    %v272 = vpop.permute.xlu0 %271
    %v274 = vlaneseq
    %v275 = vshrl.u32 %v274, 7
    %v276 = vsub.s32 0, %v275
    %v277 = vrot.slane %v241, %v276
    %v278 = vmul.f32 %v257, %v277
    %v279 = vmul.f32 %v262, %v277
    %v280 = vmul.f32 %v267, %v277
    %v281 = vmul.f32 %v272, %v277
    %v282 = vadd.f32 %v237, %v278
    %v283 = vadd.f32 %v238, %v279
    %v284 = vadd.f32 %v239, %v280
    %v285 = vadd.f32 %v240, %v281
    %v286 = vld [vmem:[%s1 + $0x6] sm:$0x1]
    %vm287 = vcmp.eq.s32.totalorder %v12, 6
    %vm288 = vcmp.eq.s32.totalorder %v13, 6
    %vm289 = vcmp.eq.s32.totalorder %v14, 6
    %vm290 = vcmp.eq.s32.totalorder %v15, 6
    %v291 = vsel %vm287, 1, 0
    %v292 = vsel %vm288, 1, 0
    %v293 = vsel %vm289, 1, 0
    %v294 = vsel %vm290, 1, 0
    %v295 = vcvt.s32.f32 %v291
    %v296 = vcvt.s32.f32 %v292
    %v297 = vcvt.s32.f32 %v293
    %v298 = vcvt.s32.f32 %v294
    %300 = vset.pattern.permute.xlu0 0
    %301 = vperm.xlu0 %300, %v295
    %v302 = vpop.permute.xlu0 %301
    %305 = vset.pattern.permute.xlu0 0
    %306 = vperm.xlu0 %305, %v296
    %v307 = vpop.permute.xlu0 %306
    %310 = vset.pattern.permute.xlu0 0
    %311 = vperm.xlu0 %310, %v297
    %v312 = vpop.permute.xlu0 %311
    %315 = vset.pattern.permute.xlu0 0
    %316 = vperm.xlu0 %315, %v298
    %v317 = vpop.permute.xlu0 %316
    %v319 = vlaneseq
    %v320 = vshrl.u32 %v319, 7
    %v321 = vsub.s32 0, %v320
    %v322 = vrot.slane %v286, %v321
    %v323 = vmul.f32 %v302, %v322
    %v324 = vmul.f32 %v307, %v322
    %v325 = vmul.f32 %v312, %v322
    %v326 = vmul.f32 %v317, %v322
    %v327 = vadd.f32 %v282, %v323
    %v328 = vadd.f32 %v283, %v324
    %v329 = vadd.f32 %v284, %v325
    %v330 = vadd.f32 %v285, %v326
    %v331 = vld [vmem:[%s1 + $0x7] sm:$0x1]
    %vm332 = vcmp.eq.s32.totalorder %v12, 7
    %vm333 = vcmp.eq.s32.totalorder %v13, 7
    %vm334 = vcmp.eq.s32.totalorder %v14, 7
    %vm335 = vcmp.eq.s32.totalorder %v15, 7
    %v336 = vsel %vm332, 1, 0
    %v337 = vsel %vm333, 1, 0
    %v338 = vsel %vm334, 1, 0
    %v339 = vsel %vm335, 1, 0
    %v340 = vcvt.s32.f32 %v336
    %v341 = vcvt.s32.f32 %v337
    %v342 = vcvt.s32.f32 %v338
    %v343 = vcvt.s32.f32 %v339
    %345 = vset.pattern.permute.xlu0 0
    %346 = vperm.xlu0 %345, %v340
    %v347 = vpop.permute.xlu0 %346
    %350 = vset.pattern.permute.xlu0 0
    %351 = vperm.xlu0 %350, %v341
    %v352 = vpop.permute.xlu0 %351
    %355 = vset.pattern.permute.xlu0 0
    %356 = vperm.xlu0 %355, %v342
    %v357 = vpop.permute.xlu0 %356
    %360 = vset.pattern.permute.xlu0 0
    %361 = vperm.xlu0 %360, %v343
    %v362 = vpop.permute.xlu0 %361
    %v364 = vlaneseq
    %v365 = vshrl.u32 %v364, 7
    %v366 = vsub.s32 0, %v365
    %v367 = vrot.slane %v331, %v366
    %v368 = vmul.f32 %v347, %v367
    %v369 = vmul.f32 %v352, %v367
    %v370 = vmul.f32 %v357, %v367
    %v371 = vmul.f32 %v362, %v367
    %v372 = vadd.f32 %v327, %v368
    %v373 = vadd.f32 %v328, %v369
    %v374 = vadd.f32 %v329, %v370
    %v375 = vadd.f32 %v330, %v371
    %376 = vst [vmem:[#allocation2] sm:$0xff] %v372
    %377 = vst [vmem:[#allocation2 + $0x8] sm:$0xff] %v373
    %378 = vst [vmem:[#allocation2 + $0x10] sm:$0xff] %v374
    %379 = vst [vmem:[#allocation2 + $0x18] sm:$0xff] %v375
    %380 = vst [vmem:[#allocation2 + $0x20] sm:$0xff] %v372
    %381 = vst [vmem:[#allocation2 + $0x28] sm:$0xff] %v373
    %382 = vst [vmem:[#allocation2 + $0x30] sm:$0xff] %v374
    %383 = vst [vmem:[#allocation2 + $0x38] sm:$0xff] %v375
    // Predicated region
    $region10: #{tpu_custom_call.1} parent=1 // pred_check
      _
    $region11: #{tpu_custom_call.1} parent=1 // pred_check_branch
      %385 = sbr.rel (0) target = $region13
    $region12: #{tpu_custom_call.1} parent=1 // pred_region
      %s387 = ssub.s32 1024, 1024
      %388 = vsyncadd [#allocation3], %s387
      %s389 = sshll.u32 [#allocation2], 4
      %s390 = int_to_ptr.vmem [resolvable:$true] %s389
      %395 = dma.vmem_to_hbm [thread:$0]  %s390, 1024, %s2, [#allocation3], 128, 128, 8
    $region13: #{tpu_custom_call.1} parent=1 // pred_fallthru
      _
    // Predicated region
    $region14: #{tpu_custom_call.1} parent=1 // pred_check
      _
    $region15: #{tpu_custom_call.1} parent=1 // pred_check_branch
      %397 = sbr.rel (0) target = $region17
    $region16: #{tpu_custom_call.1} parent=1 // pred_region
      %398 = dma.done [#allocation3], 1024
    $region17: #{tpu_custom_call.1} parent=1 // pred_fallthru
      _
    %399 = vsyncpa [#allocation3], 1

</llo_original>
